<compile_context>
chip_gen: v6e
topology: v6e:2x2x1
jax: 0.10.0
libtpu: 0.0.40
codegen_flags: <defaults>
</compile_context>

<pallas_src>
import jax
import jax.numpy as jnp
from jax.experimental import pallas as pl
from jax.experimental.pallas import tpu as pltpu


def _round_up(n, q):
    return ((n + q - 1) // q) * q


def _pick_tile(n, cap, quantum):
    """Largest block <= cap that is a multiple of `quantum` and divides n;
    falls back to the full extent (always a legal block)."""
    if n <= cap:
        return n
    t = (min(cap, n) // quantum) * quantum
    while t >= quantum:
        if n % t == 0:
            return t
        t -= quantum
    return n


# ----------------------------- pass 1 kernel --------------------------------
def _proj_kernel(x_ref, qw_ref, w1_ref, b1_ref, w2r_ref, b2_ref,
                 q12_ref, r_ref):
    x = x_ref[...]                                   # (TB, D) f32
    x_mm = x.astype(w1_ref.dtype)                    # matmul dtype (f32/bf16)

    # Stacked bias-free projections, lane-major:
    #   (2, D) x (TB, D) contracted on D -> (2, TB); row0 = alpha*q1, row1 = q2.
    q12_ref[...] = jax.lax.dot_general(
        qw_ref[...], x_mm, (((1,), (1,)), ((), ())),
        preferred_element_type=jnp.float32)

    # MLP first layer: the only big MXU pass, exactly (TB, D) @ (D, M).
    h = jax.nn.sigmoid(
        jnp.dot(x_mm, w1_ref[...], preferred_element_type=jnp.float32)
        + b1_ref[...])                               # (TB, M) f32

    # Second layer lane-major: (1, M) x (TB, M) contracted on M -> (1, TB).
    r_pre = jax.lax.dot_general(
        w2r_ref[...], h.astype(w2r_ref.dtype), (((1,), (1,)), ((), ())),
        preferred_element_type=jnp.float32)
    r_ref[...] = jax.nn.sigmoid(r_pre + b2_ref[...])


# ----------------------------- pass 2 kernel --------------------------------
def _qhat_kernel(q1_ref, q2_ref, o_ref):
    # (1, TN) + (TM, 1) -> (TM, TN); lane- and sublane-broadcasts are cheap
    # and the lane-dense output tile gets unmasked stores.
    o_ref[...] = (q1_ref[...] + q2_ref[...]).astype(o_ref.dtype)


def score_normalizer_forward(X, params, c, alpha_adj=1.0,
                             matmul_dtype=jnp.float32,
                             qhat_dtype=jnp.float32):
    """Returns (q_hat [B,B,1], r_ [B,1]) matching ScoreNormalizer.forward.

    matmul_dtype=jnp.bfloat16 enables the fast MXU path on v6e/v7x (f32
    accumulation/epilogue kept).  qhat_dtype=bf16 halves the HBM-write-bound
    pass-2 traffic (a precision decision left to the caller).
    """
    w_q1, w_q2, W1, b1, W2, b2 = params
    B, D = X.shape
    M = W1.shape[1]

    # ---- batch padding so every BlockSpec is a legal, regular tile ----
    Bp = _round_up(B, 8)
    if Bp > 512:                       # batch will be tiled along lanes
        Bp = _round_up(B, 128)
    Xp = X if Bp == B else jnp.zeros((Bp, D), X.dtype).at[:B, :].set(X)

    # ---- weight prep (traced once, outside the kernels) ----
    # Stacked lane-major projection LHS; zero padding reproduces the feature
    # slices exactly and alpha_adj is folded into the q1 row.
    qw = jnp.zeros((2, D), jnp.float32)
    qw = qw.at[0, :c].set(alpha_adj * w_q1[:, 0])
    qw = qw.at[1, c:].set(w_q2[:, 0])
    w2_row = W2.T                                     # (1, M) lane-major

    qw_mm = qw.astype(matmul_dtype)
    W1_mm = W1.astype(matmul_dtype)
    w2_mm = w2_row.astype(matmul_dtype)
    b1_f = b1.astype(jnp.float32)
    b2_f = b2.astype(jnp.float32)
    mm_isize = jnp.dtype(matmul_dtype).itemsize

    # ---------------- pass 1: fused projections ----------------
    # VMEM footprint: every spec'd array gets 2 pipeline buffers.
    # TODO(synk): for very large D*M on v7x (64 MiB VMEM) single-buffer the
    # resident weights and/or add a K/M reduction grid axis with an f32
    # accumulator ("arbitrary" semantics).
    def _pass1_bytes(tb_):
        x_t = tb_ * D * 4
        w = (2 * D + D * M + M) * mm_isize + (M + 1) * 4
        o = 3 * tb_ * 4
        return 2 * (x_t + w + o)

    cap = 512
    tb = _pick_tile(Bp, cap, 128)
    while cap > 128 and _pass1_bytes(tb) > 28 * 1024 * 1024:
        cap //= 2
        tb = _pick_tile(Bp, cap, 128)

    p1_params = dict(dimension_semantics=("parallel",))
    if _pass1_bytes(tb) > 12 * 1024 * 1024:
        p1_params["vmem_limit_bytes"] = min(
            (_pass1_bytes(tb) * 5) // 4, 60 * 1024 * 1024)

    q12, r_row = pl.pallas_call(
        _proj_kernel,
        grid=(Bp // tb,),
        in_specs=[
            pl.BlockSpec((tb, D), lambda i: (i, 0)),      # X tile
            pl.BlockSpec((2, D), lambda i: (0, 0)),       # stacked [a*wq1; wq2]
            pl.BlockSpec((D, M), lambda i: (0, 0)),       # W1
            pl.BlockSpec((1, M), lambda i: (0, 0)),       # b1
            pl.BlockSpec((1, M), lambda i: (0, 0)),       # W2^T (lane-major)
            pl.BlockSpec((1, 1), lambda i: (0, 0)),       # b2
        ],
        out_specs=(
            pl.BlockSpec((2, tb), lambda i: (0, i)),      # [alpha*q1 ; q2] rows
            pl.BlockSpec((1, tb), lambda i: (0, i)),      # r row
        ),
        out_shape=(
            jax.ShapeDtypeStruct((2, Bp), jnp.float32),
            jax.ShapeDtypeStruct((1, Bp), jnp.float32),
        ),
        compiler_params=pltpu.CompilerParams(**p1_params),
        cost_estimate=pl.CostEstimate(
            flops=2 * Bp * D * (M + 2) + 2 * Bp * M,
            transcendentals=Bp * (M + 1),
            bytes_accessed=4 * Bp * D + mm_isize * (D * (M + 2) + M)
            + 4 * (M + 1 + 3 * Bp)),
    )(Xp, qw_mm, W1_mm, b1_f, w2_mm, b2_f)

    q1_row = q12[0:1, :]                                  # (1, Bp) lane-major
    q2_col = jnp.transpose(q12[1:2, :])                   # (Bp, 1): Bp*4 bytes
    r_ = jnp.transpose(r_row)[:B, :]                      # (B, 1)

    # -------- pass 2: lane-dense outer sum q_hat[i,j] = a*q1[j] + q2[i] -----
    tn = _pick_tile(Bp, 1024, 128)
    tm_cap = 1024
    if Bp // tn < 2:   # keep >=2 grid points on a parallel axis (v7x: 2 TCs)
        tm_cap = max(8, (Bp // 2) // 8 * 8)
    tm = _pick_tile(Bp, tm_cap, 8)

    q_isize = jnp.dtype(qhat_dtype).itemsize
    qhat2d = pl.pallas_call(
        _qhat_kernel,
        grid=(Bp // tm, Bp // tn),
        in_specs=[
            pl.BlockSpec((1, tn), lambda i, j: (0, j)),   # q1 row slab
            pl.BlockSpec((tm, 1), lambda i, j: (i, 0)),   # q2 column slab
        ],
        out_specs=pl.BlockSpec((tm, tn), lambda i, j: (i, j)),
        out_shape=jax.ShapeDtypeStruct((Bp, Bp), qhat_dtype),
        compiler_params=pltpu.CompilerParams(
            dimension_semantics=("parallel", "parallel")),
        cost_estimate=pl.CostEstimate(
            flops=Bp * Bp, transcendentals=0,
            bytes_accessed=q_isize * Bp * Bp + 8 * Bp),
    )(q1_row, q2_col)

    q_hat = qhat2d[:B, :B, None]
    return q_hat, r_


def init_params(key, in_dim, c, ratio):
    """Deterministic synthetic parameters (shapes from the module __init__)."""
    mid_dim = int(in_dim * ratio)
    k1, k2, k3, k4, k5, k6 = jax.random.split(key, 6)
    # stored as (in_features, out_features)
    w_q1 = 0.1 * jax.random.normal(k1, (c, 1), jnp.float32)
    w_q2 = 0.1 * jax.random.normal(k2, (in_dim - c, 1), jnp.float32)
    W1 = 0.1 * jax.random.normal(k3, (in_dim, mid_dim), jnp.float32)
    b1 = 0.1 * jax.random.normal(k4, (1, mid_dim), jnp.float32)
    W2 = 0.1 * jax.random.normal(k5, (mid_dim, 1), jnp.float32)
    b2 = 0.1 * jax.random.normal(k6, (1, 1), jnp.float32)
    return (w_q1, w_q2, W1, b1, W2, b2)


def reference_forward(X, params, c, alpha_adj=1.0):
    """Pure-JAX reference reproducing the PyTorch broadcasting exactly."""
    w_q1, w_q2, W1, b1, W2, b2 = params
    q1 = X[:, :c] @ w_q1                                    # (B, 1)
    q2 = X[:, c:] @ w_q2                                    # (B, 1)
    q_hat = (alpha_adj * q1)[None, :, :] + q2[:, :, None]   # (B, B, 1)
    h = jax.nn.sigmoid(X @ W1 + b1)
    r_ = jax.nn.sigmoid(h @ W2 + b2)
    return q_hat, r_


if __name__ == "__main__":
    B, in_dim, c, ratio, alpha_adj = 8, 32, 8, 0.5, 1.25

    key = jax.random.PRNGKey(0)
    kx, kp = jax.random.split(key)
    X = jax.random.normal(kx, (B, in_dim), jnp.float32)
    params = init_params(kp, in_dim, c, ratio)

    q_hat, r_ = score_normalizer_forward(X, params, c, alpha_adj)
    jax.block_until_ready((q_hat, r_))

    q_ref, r_ref = reference_forward(X, params, c, alpha_adj)
    assert q_hat.shape == (B, B, 1) and r_.shape == (B, 1)
    assert jnp.allclose(q_hat, q_ref, atol=1e-5), "q_hat mismatch"
    assert jnp.allclose(r_, r_ref, atol=1e-5), "r_ mismatch"

    print("KERNEL_OK")
</pallas_src>

<mosaic_0001>
module attributes {stable_mosaic.version = 11 : i64} {
  func.func @_proj_kernel(%arg0: i32, %arg1: memref<8x32xf32, #tpu.memory_space<vmem>>, %arg2: memref<2x32xf32, #tpu.memory_space<vmem>>, %arg3: memref<32x16xf32, #tpu.memory_space<vmem>>, %arg4: memref<1x16xf32, #tpu.memory_space<vmem>>, %arg5: memref<1x16xf32, #tpu.memory_space<vmem>>, %arg6: memref<1x1xf32, #tpu.memory_space<vmem>>, %arg7: memref<2x8xf32, #tpu.memory_space<vmem>>, %arg8: memref<1x8xf32, #tpu.memory_space<vmem>>) attributes {dimension_semantics = [#tpu.dimension_semantics<parallel>], iteration_bounds = array<i64: 1>, scalar_prefetch = 0 : i64, scratch_operands = 0 : i64, tpu.core_type = #tpu.core_type<tc>, window_params = [{transform_indices = @transform_0, window_bounds = array<i64: 8, 32>}, {pipeline_mode = #tpu.pipeline_mode<synchronous>, transform_indices = @transform_1, window_bounds = array<i64: 2, 32>}, {pipeline_mode = #tpu.pipeline_mode<synchronous>, transform_indices = @transform_2, window_bounds = array<i64: 32, 16>}, {pipeline_mode = #tpu.pipeline_mode<synchronous>, transform_indices = @transform_3, window_bounds = array<i64: 1, 16>}, {pipeline_mode = #tpu.pipeline_mode<synchronous>, transform_indices = @transform_4, window_bounds = array<i64: 1, 16>}, {pipeline_mode = #tpu.pipeline_mode<synchronous>, transform_indices = @transform_5, window_bounds = array<i64: 1, 1>}, {transform_indices = @transform_6, window_bounds = array<i64: 2, 8>}, {transform_indices = @transform_7, window_bounds = array<i64: 1, 8>}]} {
    %c0 = arith.constant 0 : index
    %c0_0 = arith.constant 0 : index
    %0 = vector.load %arg1[%c0, %c0_0] : memref<8x32xf32, #tpu.memory_space<vmem>>, vector<8x32xf32>
    %c0_1 = arith.constant 0 : index
    %c0_2 = arith.constant 0 : index
    %1 = vector.load %arg2[%c0_1, %c0_2] : memref<2x32xf32, #tpu.memory_space<vmem>>, vector<2x32xf32>
    %cst = arith.constant dense<0.000000e+00> : vector<2x8xf32>
    %2 = tpu.matmul %1, %0, %cst {dimension_numbers = #tpu.dot_dimension_numbers<[1], [1], [0], [0], [0, 0, 1, 0], [], []>} : vector<2x32xf32>, vector<8x32xf32>, vector<2x8xf32> -> vector<2x8xf32>
    %c0_3 = arith.constant 0 : index
    %c0_4 = arith.constant 0 : index
    %3 = vector.load %arg7[%c0_3, %c0_4] : memref<2x8xf32, #tpu.memory_space<vmem>>, vector<2x8xf32>
    tpu.vector_store %arg7[%c0_3, %c0_4], %2 {strides = array<i32>} : memref<2x8xf32, #tpu.memory_space<vmem>>, vector<2x8xf32>,
    %c0_5 = arith.constant 0 : index
    %c0_6 = arith.constant 0 : index
    %4 = vector.load %arg3[%c0_5, %c0_6] : memref<32x16xf32, #tpu.memory_space<vmem>>, vector<32x16xf32>
    %cst_7 = arith.constant dense<0.000000e+00> : vector<8x16xf32>
    %5 = tpu.matmul %0, %4, %cst_7 {dimension_numbers = #tpu.dot_dimension_numbers<[1], [0], [0], [1], [0, 0, 1, 1], [], []>} : vector<8x32xf32>, vector<32x16xf32>, vector<8x16xf32> -> vector<8x16xf32>
    %c0_8 = arith.constant 0 : index
    %c0_9 = arith.constant 0 : index
    %6 = vector.load %arg4[%c0_8, %c0_9] : memref<1x16xf32, #tpu.memory_space<vmem>>, vector<1x16xf32>
    %7 = vector.broadcast %6 : vector<1x16xf32> to vector<8x16xf32>
    %8 = arith.addf %5, %7 : vector<8x16xf32>
    %9 = arith.negf %8 : vector<8x16xf32>
    %10 = math.exp %9 : vector<8x16xf32>
    %cst_10 = arith.constant 1.000000e+00 : f32
    %11 = vector.broadcast %cst_10 : f32 to vector<8x16xf32>
    %12 = arith.addf %11, %10 : vector<8x16xf32>
    %13 = arith.divf %11, %12 : vector<8x16xf32>
    %c0_11 = arith.constant 0 : index
    %c0_12 = arith.constant 0 : index
    %14 = vector.load %arg5[%c0_11, %c0_12] : memref<1x16xf32, #tpu.memory_space<vmem>>, vector<1x16xf32>
    %cst_13 = arith.constant dense<0.000000e+00> : vector<1x8xf32>
    %15 = tpu.matmul %14, %13, %cst_13 {dimension_numbers = #tpu.dot_dimension_numbers<[1], [1], [0], [0], [0, 0, 1, 0], [], []>} : vector<1x16xf32>, vector<8x16xf32>, vector<1x8xf32> -> vector<1x8xf32>
    %c0_14 = arith.constant 0 : index
    %c0_15 = arith.constant 0 : index
    %16 = vector.load %arg6[%c0_14, %c0_15] : memref<1x1xf32, #tpu.memory_space<vmem>>, vector<1x1xf32>
    %17 = vector.broadcast %16 : vector<1x1xf32> to vector<1x8xf32>
    %18 = arith.addf %15, %17 : vector<1x8xf32>
    %19 = arith.negf %18 : vector<1x8xf32>
    %20 = math.exp %19 : vector<1x8xf32>
    %cst_16 = arith.constant 1.000000e+00 : f32
    %21 = vector.broadcast %cst_16 : f32 to vector<1x8xf32>
    %22 = arith.addf %21, %20 : vector<1x8xf32>
    %23 = arith.divf %21, %22 : vector<1x8xf32>
    %c0_17 = arith.constant 0 : index
    %c0_18 = arith.constant 0 : index
    %24 = vector.load %arg8[%c0_17, %c0_18] : memref<1x8xf32, #tpu.memory_space<vmem>>, vector<1x8xf32>
    tpu.vector_store %arg8[%c0_17, %c0_18], %23 {strides = array<i32>} : memref<1x8xf32, #tpu.memory_space<vmem>>, vector<1x8xf32>,
    return
  }
  func.func @transform_0(%arg0: i32) -> (i32, i32) {
    %c0_i32 = arith.constant 0 : i32
    %c0_i32_0 = arith.constant 0 : i32
    return %arg0, %c0_i32 : i32, i32
  }
  func.func @transform_1(%arg0: i32) -> (i32, i32) {
    %c0_i32 = arith.constant 0 : i32
    %c0_i32_0 = arith.constant 0 : i32
    %c0_i32_1 = arith.constant 0 : i32
    return %c0_i32, %c0_i32_0 : i32, i32
  }
  func.func @transform_2(%arg0: i32) -> (i32, i32) {
    %c0_i32 = arith.constant 0 : i32
    %c0_i32_0 = arith.constant 0 : i32
    %c0_i32_1 = arith.constant 0 : i32
    return %c0_i32, %c0_i32_0 : i32, i32
  }
  func.func @transform_3(%arg0: i32) -> (i32, i32) {
    %c0_i32 = arith.constant 0 : i32
    %c0_i32_0 = arith.constant 0 : i32
    %c0_i32_1 = arith.constant 0 : i32
    return %c0_i32, %c0_i32_0 : i32, i32
  }
  func.func @transform_4(%arg0: i32) -> (i32, i32) {
    %c0_i32 = arith.constant 0 : i32
    %c0_i32_0 = arith.constant 0 : i32
    %c0_i32_1 = arith.constant 0 : i32
    return %c0_i32, %c0_i32_0 : i32, i32
  }
  func.func @transform_5(%arg0: i32) -> (i32, i32) {
    %c0_i32 = arith.constant 0 : i32
    %c0_i32_0 = arith.constant 0 : i32
    %c0_i32_1 = arith.constant 0 : i32
    return %c0_i32, %c0_i32_0 : i32, i32
  }
  func.func @transform_6(%arg0: i32) -> (i32, i32) {
    %c0_i32 = arith.constant 0 : i32
    %c0_i32_0 = arith.constant 0 : i32
    return %c0_i32, %arg0 : i32, i32
  }
  func.func @transform_7(%arg0: i32) -> (i32, i32) {
    %c0_i32 = arith.constant 0 : i32
    %c0_i32_0 = arith.constant 0 : i32
    return %c0_i32, %arg0 : i32, i32
  }
}

</mosaic_0001>

<llo_original>
// kernel: tpu_custom_call.1
$region0: #{tpu_custom_call.1}
  #allocation0 [shape = 'u32[]', space=smem, size = 0x4, offset = 0x4, fixed_abs, tag = 'smem constant byte address 0x4 - core index']
  #allocation1 [shape = 'u32[144,128]{1,0:T(1,128)}', space=vmem, size = 0x12000, scoped, tag = 'internal scratch']
  #allocation2 [shape = 'f32[1,1]{1,0:T(1,128)S(1)}', space=vmem, size = 0x200, scoped, tag = 'scoped memory for tpu_custom_call.1']
  %s0 = inlined_call_operand.vmem [shape: f32[8,32], index: 0, kind: input, shape index: {}]
  %s1 = inlined_call_operand.vmem [shape: f32[2,32], index: 1, kind: input, shape index: {}]
  %s2 = inlined_call_operand.vmem [shape: f32[32,16], index: 2, kind: input, shape index: {}]
  %s3 = inlined_call_operand.vmem [shape: f32[1,16], index: 3, kind: input, shape index: {}]
  %s4 = inlined_call_operand.vmem [shape: f32[1,16], index: 4, kind: input, shape index: {}]
  %s5 = inlined_call_operand.<no memory space> [shape: f32[1,1], index: 5, kind: input, shape index: {}]
  %s6 = inlined_call_operand.hbm [shape: f32[2,8], index: 6, kind: output, shape index: {0}]
  %s7 = inlined_call_operand.hbm [shape: f32[1,8], index: 7, kind: output, shape index: {1}]
  %8 = xla_tuple %s6, %s7
  %s9 = sld [smem:[#allocation0]]
  $region42: #{tpu_custom_call.1} parent=0
    _
  %s11 = ssub.s32 1, %s9
  %s12 = scalar_select 0, %s11, %s9
  %v13 = vstv %s5
  %14 = vst [vmem:[#allocation2] sm:$0x1] %v13
  $region1: #{tpu_custom_call.1} parent=0
    #allocation3 [shape = 'u8[1024]{0}', space=vmem, size = 0x400, scoped, tag = 'output window, operand 0, single buffered']
    #allocation4 [shape = 's32[1]{0}', space=sflag, size = 0x4, scoped, tag = 'scoped memory for tpu_custom_call.1']
    #allocation5 [shape = 'u8[512]{0}', space=vmem, size = 0x400, scoped, tag = 'output window, operand 1, single buffered']
    #allocation6 [shape = 's32[1]{0}', space=sflag, size = 0x4, scoped, tag = 'scoped memory for tpu_custom_call.1']
    %15 = vsyncpa [#allocation4], 0
    %16 = vsyncpa [#allocation6], 0
    // Predicated region
    $region2: #{tpu_custom_call.1} parent=1 // pred_check
      _
    $region3: #{tpu_custom_call.1} parent=1 // pred_check_branch
      %18 = sbr.rel (0) target = $region5
    $region4: #{tpu_custom_call.1} parent=1 // pred_region
      _
    $region5: #{tpu_custom_call.1} parent=1 // pred_fallthru
      _
    // Predicated region
    $region6: #{tpu_custom_call.1} parent=1 // pred_check
      _
    $region7: #{tpu_custom_call.1} parent=1 // pred_check_branch
      %20 = sbr.rel (0) target = $region9
    $region8: #{tpu_custom_call.1} parent=1 // pred_region
      _
    $region9: #{tpu_custom_call.1} parent=1 // pred_fallthru
      _
    // Predicated region
    $region10: #{tpu_custom_call.1} parent=1 // pred_check
      _
    $region11: #{tpu_custom_call.1} parent=1 // pred_check_branch
      %22 = sbr.rel (0) target = $region13
    $region12: #{tpu_custom_call.1} parent=1 // pred_region
      _
    $region13: #{tpu_custom_call.1} parent=1 // pred_fallthru
      _
    // Predicated region
    $region14: #{tpu_custom_call.1} parent=1 // pred_check
      _
    $region15: #{tpu_custom_call.1} parent=1 // pred_check_branch
      %24 = sbr.rel (0) target = $region17
    $region16: #{tpu_custom_call.1} parent=1 // pred_region
      _
    $region17: #{tpu_custom_call.1} parent=1 // pred_fallthru
      _
    // Predicated region
    $region18: #{tpu_custom_call.1} parent=1 // pred_check
      _
    $region19: #{tpu_custom_call.1} parent=1 // pred_check_branch
      %26 = sbr.rel (0) target = $region21
    $region20: #{tpu_custom_call.1} parent=1 // pred_region
      _
    $region21: #{tpu_custom_call.1} parent=1 // pred_fallthru
      _
    // Predicated region
    $region22: #{tpu_custom_call.1} parent=1 // pred_check
      _
    $region23: #{tpu_custom_call.1} parent=1 // pred_check_branch
      %28 = sbr.rel (0) target = $region25
    $region24: #{tpu_custom_call.1} parent=1 // pred_region
      _
    $region25: #{tpu_custom_call.1} parent=1 // pred_fallthru
      _
    %v29 = vld [vmem:[%s0] sm:$0xff]
    %v30 = vld [vmem:[%s1] sm:$0x3]
    %vm31 = vcmask 261120
    %v33 = vsel %vm31, %v30, 0
    %v36 = vsel %vm31, %v29, 0
    %38 = vmatprep.subr.mxu0 0.0
    %39 = vmatpush1.xpose.msra.mxu0 0.0
    %40 = vmatprep.subr.mxu0 0.0
    %41 = vmatpush1.xpose.msra.mxu0 0.0
    %42 = vmatprep.subr.mxu0 0.0
    %43 = vmatpush1.xpose.msra.mxu0 0.0
    %44 = vmatprep.subr.mxu0 0.0
    %45 = vmatpush1.xpose.msra.mxu0 0.0
    %46 = vmatprep.subr.mxu0 0.0
    %47 = vmatpush1.xpose.msra.mxu0 0.0
    %48 = vmatprep.subr.mxu0 0.0
    %49 = vmatpush1.xpose.msra.mxu0 0.0
    %50 = vmatprep.subr.mxu0 0.0
    %51 = vmatpush1.xpose.msra.mxu0 0.0
    %52 = vmatprep.subr.mxu0 0.0
    %53 = vmatpush1.xpose.msra.mxu0 0.0
    %54 = vmatprep.subr.mxu0 0.0
    %55 = vmatpush1.xpose.msra.mxu0 0.0
    %56 = vmatprep.subr.mxu0 0.0
    %57 = vmatpush1.xpose.msra.mxu0 0.0
    %58 = vmatprep.subr.mxu0 0.0
    %59 = vmatpush1.xpose.msra.mxu0 0.0
    %60 = vmatprep.subr.mxu0 0.0
    %61 = vmatpush1.xpose.msra.mxu0 0.0
    %62 = vmatprep.subr.mxu0 0.0
    %63 = vmatpush1.xpose.msra.mxu0 0.0
    %64 = vmatprep.subr.mxu0 0.0
    %65 = vmatpush1.xpose.msra.mxu0 0.0
    %66 = vmatprep.subr.mxu0 0.0
    %67 = vmatpush1.xpose.msra.mxu0 0.0
    %68 = vmatprep.subr.mxu0 0.0
    %69 = vmatpush1.xpose.msra.mxu0 %v36
    %70 = vmatprep.subr.mxu0 0.0
    %71 = vmatpush2.xpose.msra.mxu0 0.0
    %72 = vmatprep.subr.mxu0 0.0
    %73 = vmatpush2.xpose.msra.mxu0 0.0
    %74 = vmatprep.subr.mxu0 0.0
    %75 = vmatpush2.xpose.msra.mxu0 0.0
    %76 = vmatprep.subr.mxu0 0.0
    %77 = vmatpush2.xpose.msra.mxu0 0.0
    %78 = vmatprep.subr.mxu0 0.0
    %79 = vmatpush2.xpose.msra.mxu0 0.0
    %80 = vmatprep.subr.mxu0 0.0
    %81 = vmatpush2.xpose.msra.mxu0 0.0
    %82 = vmatprep.subr.mxu0 0.0
    %83 = vmatpush2.xpose.msra.mxu0 0.0
    %84 = vmatprep.subr.mxu0 0.0
    %85 = vmatpush2.xpose.msra.mxu0 0.0
    %86 = vmatprep.subr.mxu0 0.0
    %87 = vmatpush2.xpose.msra.mxu0 0.0
    %88 = vmatprep.subr.mxu0 0.0
    %89 = vmatpush2.xpose.msra.mxu0 0.0
    %90 = vmatprep.subr.mxu0 0.0
    %91 = vmatpush2.xpose.msra.mxu0 0.0
    %92 = vmatprep.subr.mxu0 0.0
    %93 = vmatpush2.xpose.msra.mxu0 0.0
    %94 = vmatprep.subr.mxu0 0.0
    %95 = vmatpush2.xpose.msra.mxu0 0.0
    %96 = vmatprep.subr.mxu0 0.0
    %97 = vmatpush2.xpose.msra.mxu0 0.0
    %98 = vmatprep.subr.mxu0 0.0
    %99 = vmatpush2.xpose.msra.mxu0 0.0
    %100 = vmatprep.subr.mxu0 0.0
    %101 = vmatpush2.xpose.msra.mxu0 0.0
    %102 = vmatprep.mubr.f32.mxu0 0.0
    %103 = vmatmul.mubr.f32.gmra.mxu0 %v33
    %v104 = vpop.f32.mrf.mxu0
    %v105 = vadd.f32 0.0, %v104
    %v106 = vpop.f32.mrf.mxu0
    %107 = vdwg.mxu0
    %vm108 = vcmask 58368
    %109 = vst.msk [vmem:[#allocation3] sm:$0x3] %vm108, %v105
    %v110 = vld [vmem:[%s2] sm:$0xff]
    %v111 = vld [vmem:[%s2 + $0x8] sm:$0xff]
    %v112 = vld [vmem:[%s2 + $0x10] sm:$0xff]
    %v113 = vld [vmem:[%s2 + $0x18] sm:$0xff]
    %v114 = vld [vmem:[%s3] sm:$0x1]
    %v116 = vlaneseq
    %v117 = vshrl.u32 %v116, 7
    %v118 = vsub.s32 0, %v117
    %v119 = vrot.slane %v114, %v118
    %121 = vmatprep.subr.mxu0 0.0
    %122 = vmatpush1.msra.mxu0 0.0
    %123 = vmatprep.subr.mxu0 0.0
    %124 = vmatpush1.msra.mxu0 0.0
    %125 = vmatprep.subr.mxu0 0.0
    %126 = vmatpush1.msra.mxu0 0.0
    %127 = vmatprep.subr.mxu0 0.0
    %128 = vmatpush1.msra.mxu0 0.0
    %129 = vmatprep.subr.mxu0 0.0
    %130 = vmatpush1.msra.mxu0 0.0
    %131 = vmatprep.subr.mxu0 0.0
    %132 = vmatpush1.msra.mxu0 0.0
    %133 = vmatprep.subr.mxu0 0.0
    %134 = vmatpush1.msra.mxu0 0.0
    %135 = vmatprep.subr.mxu0 0.0
    %136 = vmatpush1.msra.mxu0 0.0
    %137 = vmatprep.subr.mxu0 0.0
    %138 = vmatpush1.msra.mxu0 0.0
    %139 = vmatprep.subr.mxu0 0.0
    %140 = vmatpush1.msra.mxu0 0.0
    %141 = vmatprep.subr.mxu0 0.0
    %142 = vmatpush1.msra.mxu0 0.0
    %143 = vmatprep.subr.mxu0 0.0
    %144 = vmatpush1.msra.mxu0 0.0
    %145 = vmatprep.subr.mxu0 0.0
    %146 = vmatpush1.msra.mxu0 %v113
    %147 = vmatprep.subr.mxu0 0.0
    %148 = vmatpush1.msra.mxu0 %v112
    %149 = vmatprep.subr.mxu0 0.0
    %150 = vmatpush1.msra.mxu0 %v111
    %151 = vmatprep.subr.mxu0 0.0
    %152 = vmatpush1.msra.mxu0 %v110
    %153 = vmatprep.subr.mxu0 0.0
    %154 = vmatpush2.msra.mxu0 0.0
    %155 = vmatprep.subr.mxu0 0.0
    %156 = vmatpush2.msra.mxu0 0.0
    %157 = vmatprep.subr.mxu0 0.0
    %158 = vmatpush2.msra.mxu0 0.0
    %159 = vmatprep.subr.mxu0 0.0
    %160 = vmatpush2.msra.mxu0 0.0
    %161 = vmatprep.subr.mxu0 0.0
    %162 = vmatpush2.msra.mxu0 0.0
    %163 = vmatprep.subr.mxu0 0.0
    %164 = vmatpush2.msra.mxu0 0.0
    %165 = vmatprep.subr.mxu0 0.0
    %166 = vmatpush2.msra.mxu0 0.0
    %167 = vmatprep.subr.mxu0 0.0
    %168 = vmatpush2.msra.mxu0 0.0
    %169 = vmatprep.subr.mxu0 0.0
    %170 = vmatpush2.msra.mxu0 0.0
    %171 = vmatprep.subr.mxu0 0.0
    %172 = vmatpush2.msra.mxu0 0.0
    %173 = vmatprep.subr.mxu0 0.0
    %174 = vmatpush2.msra.mxu0 0.0
    %175 = vmatprep.subr.mxu0 0.0
    %176 = vmatpush2.msra.mxu0 0.0
    %177 = vmatprep.subr.mxu0 0.0
    %178 = vmatpush2.msra.mxu0 0.0
    %179 = vmatprep.subr.mxu0 0.0
    %180 = vmatpush2.msra.mxu0 0.0
    %181 = vmatprep.subr.mxu0 0.0
    %182 = vmatpush2.msra.mxu0 0.0
    %183 = vmatprep.subr.mxu0 0.0
    %184 = vmatpush2.msra.mxu0 0.0
    %185 = vmatprep.mubr.f32.mxu0 0.0
    %186 = vmatmul.mubr.f32.gmra.mxu0 %v36
    %v187 = vpop.f32.mrf.mxu0
    %v188 = vadd.f32 %v119, %v187
    %v189 = vpop.f32.mrf.mxu0
    %190 = vdwg.mxu0
    %v191 = vxor.u32 %v188, 2147483648
    %v192 = vmul.f32 %v191, 1.442695
    %v193 = vpow.pop %v192
    %v194 = vadd.f32 %v193, 1.0
    %v195 = vrcp.pop %v194
    %v196 = vmul.f32 1.0, %v195
    %v197 = vld [vmem:[%s4] sm:$0x1]
    %v198 = vld [vmem:[#allocation2] sm:$0x1]
    %200 = vset.pattern.permute.xlu0 0
    %201 = vperm.xlu0 %200, %v198
    %v202 = vpop.permute.xlu0 %201
    %v204 = vlaneseq
    %v205 = vshrl.u32 %v204, 7
    %v206 = vsub.s32 0, %v205
    %v207 = vrot.slane %v202, %v206
    %vm208 = vcmask 130048
    %v210 = vsel %vm208, %v197, 0
    %v213 = vsel %vm208, %v196, 0
    %215 = vmatprep.subr.mxu0 0.0
    %216 = vmatpush1.xpose.msra.mxu0 0.0
    %217 = vmatprep.subr.mxu0 0.0
    %218 = vmatpush1.xpose.msra.mxu0 0.0
    %219 = vmatprep.subr.mxu0 0.0
    %220 = vmatpush1.xpose.msra.mxu0 0.0
    %221 = vmatprep.subr.mxu0 0.0
    %222 = vmatpush1.xpose.msra.mxu0 0.0
    %223 = vmatprep.subr.mxu0 0.0
    %224 = vmatpush1.xpose.msra.mxu0 0.0
    %225 = vmatprep.subr.mxu0 0.0
    %226 = vmatpush1.xpose.msra.mxu0 0.0
    %227 = vmatprep.subr.mxu0 0.0
    %228 = vmatpush1.xpose.msra.mxu0 0.0
    %229 = vmatprep.subr.mxu0 0.0
    %230 = vmatpush1.xpose.msra.mxu0 0.0
    %231 = vmatprep.subr.mxu0 0.0
    %232 = vmatpush1.xpose.msra.mxu0 0.0
    %233 = vmatprep.subr.mxu0 0.0
    %234 = vmatpush1.xpose.msra.mxu0 0.0
    %235 = vmatprep.subr.mxu0 0.0
    %236 = vmatpush1.xpose.msra.mxu0 0.0
    %237 = vmatprep.subr.mxu0 0.0
    %238 = vmatpush1.xpose.msra.mxu0 0.0
    %239 = vmatprep.subr.mxu0 0.0
    %240 = vmatpush1.xpose.msra.mxu0 0.0
    %241 = vmatprep.subr.mxu0 0.0
    %242 = vmatpush1.xpose.msra.mxu0 0.0
    %243 = vmatprep.subr.mxu0 0.0
    %244 = vmatpush1.xpose.msra.mxu0 0.0
    %245 = vmatprep.subr.mxu0 0.0
    %246 = vmatpush1.xpose.msra.mxu0 %v213
    %247 = vmatprep.subr.mxu0 0.0
    %248 = vmatpush2.xpose.msra.mxu0 0.0
    %249 = vmatprep.subr.mxu0 0.0
    %250 = vmatpush2.xpose.msra.mxu0 0.0
    %251 = vmatprep.subr.mxu0 0.0
    %252 = vmatpush2.xpose.msra.mxu0 0.0
    %253 = vmatprep.subr.mxu0 0.0
    %254 = vmatpush2.xpose.msra.mxu0 0.0
    %255 = vmatprep.subr.mxu0 0.0
    %256 = vmatpush2.xpose.msra.mxu0 0.0
    %257 = vmatprep.subr.mxu0 0.0
    %258 = vmatpush2.xpose.msra.mxu0 0.0
    %259 = vmatprep.subr.mxu0 0.0
    %260 = vmatpush2.xpose.msra.mxu0 0.0
    %261 = vmatprep.subr.mxu0 0.0
    %262 = vmatpush2.xpose.msra.mxu0 0.0
    %263 = vmatprep.subr.mxu0 0.0
    %264 = vmatpush2.xpose.msra.mxu0 0.0
    %265 = vmatprep.subr.mxu0 0.0
    %266 = vmatpush2.xpose.msra.mxu0 0.0
    %267 = vmatprep.subr.mxu0 0.0
    %268 = vmatpush2.xpose.msra.mxu0 0.0
    %269 = vmatprep.subr.mxu0 0.0
    %270 = vmatpush2.xpose.msra.mxu0 0.0
    %271 = vmatprep.subr.mxu0 0.0
    %272 = vmatpush2.xpose.msra.mxu0 0.0
    %273 = vmatprep.subr.mxu0 0.0
    %274 = vmatpush2.xpose.msra.mxu0 0.0
    %275 = vmatprep.subr.mxu0 0.0
    %276 = vmatpush2.xpose.msra.mxu0 0.0
    %277 = vmatprep.subr.mxu0 0.0
    %278 = vmatpush2.xpose.msra.mxu0 0.0
    %279 = vmatprep.mubr.f32.mxu0 0.0
    %280 = vmatmul.mubr.f32.gmra.mxu0 %v210
    %v281 = vpop.f32.mrf.mxu0
    %v282 = vadd.f32 %v207, %v281
    %v283 = vpop.f32.mrf.mxu0
    %284 = vdwg.mxu0
    %v285 = vxor.u32 %v282, 2147483648
    %v286 = vmul.f32 %v285, 1.442695
    %v287 = vpow.pop %v286
    %v288 = vadd.f32 %v287, 1.0
    %v289 = vrcp.pop %v288
    %v290 = vmul.f32 1.0, %v289
    %vm291 = vcmask 57344
    %292 = vst.msk [vmem:[#allocation5] sm:$0x1] %vm291, %v290
    // Predicated region
    $region26: #{tpu_custom_call.1} parent=1 // pred_check
      _
    $region27: #{tpu_custom_call.1} parent=1 // pred_check_branch
      %294 = sbr.rel (0) target = $region29
    $region28: #{tpu_custom_call.1} parent=1 // pred_region
      %s296 = ssub.s32 32, 32
      %297 = vsyncadd [#allocation4], %s296
      %s299 = sshll.u32 [#allocation3], 4
      %s300 = int_to_ptr.vmem [resolvable:$true] %s299
      %302 = dma.vmem_to_hbm [thread:$0]  %s300, 32, %s6, [#allocation4]
    $region29: #{tpu_custom_call.1} parent=1 // pred_fallthru
      _
    // Predicated region
    $region30: #{tpu_custom_call.1} parent=1 // pred_check
      _
    $region31: #{tpu_custom_call.1} parent=1 // pred_check_branch
      %304 = sbr.rel (0) target = $region33
    $region32: #{tpu_custom_call.1} parent=1 // pred_region
      %s306 = ssub.s32 16, 16
      %307 = vsyncadd [#allocation6], %s306
      %s309 = sshll.u32 [#allocation5], 4
      %s310 = int_to_ptr.vmem [resolvable:$true] %s309
      %312 = dma.vmem_to_hbm [thread:$0]  %s310, 16, %s7, [#allocation6]
    $region33: #{tpu_custom_call.1} parent=1 // pred_fallthru
      _
    // Predicated region
    $region34: #{tpu_custom_call.1} parent=1 // pred_check
      _
    $region35: #{tpu_custom_call.1} parent=1 // pred_check_branch
      %314 = sbr.rel (0) target = $region37
    $region36: #{tpu_custom_call.1} parent=1 // pred_region
      %315 = dma.done [#allocation4], 32
    $region37: #{tpu_custom_call.1} parent=1 // pred_fallthru
      _
    // Predicated region
    $region38: #{tpu_custom_call.1} parent=1 // pred_check
      _
    $region39: #{tpu_custom_call.1} parent=1 // pred_check_branch
      %317 = sbr.rel (0) target = $region41
    $region40: #{tpu_custom_call.1} parent=1 // pred_region
      %318 = dma.done [#allocation6], 16
    $region41: #{tpu_custom_call.1} parent=1 // pred_fallthru
      _
    %319 = vsyncpa [#allocation4], 1
    %320 = vsyncpa [#allocation6], 1

</llo_original>
